<compile_context>
chip_gen: v6e
topology: v6e:2x2x1
jax: 0.10.0
libtpu: 0.0.40
codegen_flags: <defaults>
</compile_context>

<pallas_src>
import functools

import jax
import jax.numpy as jnp
from jax.experimental import pallas as pl
from jax.experimental.pallas import tpu as pltpu


def _round_up(x: int, m: int) -> int:
    return ((x + m - 1) // m) * m


def _sigmoid_via_tanh(x):
    # sigmoid(x) == 0.5 * (tanh(x/2) + 1): single EUP op, no exact divide,
    # keeps the elementwise tail off the VALU so it hides under the store DMA.
    return 0.5 * (jnp.tanh(0.5 * x) + 1.0)


def _inner_product_decoder_kernel(z1_ref, z2_ref, o_ref, *, activation):
    """One (tm, tn) output tile: o = act(z1_tile @ z2_tile^T), full D per tile.

    z1_ref: (tm, D) tile of z1
    z2_ref: (tn, D) tile of z2 — contracted on the last dim (no transpose)
    o_ref : (tm, tn) output tile
    """
    acc = jax.lax.dot_general(
        z1_ref[...],
        z2_ref[...],
        dimension_numbers=(((1,), (1,)), ((), ())),  # contract last dims
        preferred_element_type=jnp.float32,          # f32 accumulation
    )
    if activation is not None:
        # NOTE(v6e/v7x micro-opt): when out_dtype is bf16 the tail could run in
        # bf16; kept in f32 so the same kernel stays optimal on v5e (no bf16
        # VPU/EUP there) — the tail is hidden under the output DMA anyway.
        acc = activation(acc)
    o_ref[...] = acc.astype(o_ref.dtype)


def inner_product_decoder(z1, z2, *, activation=_sigmoid_via_tanh,
                          tm=1024, tn=1024, out_dtype=None,
                          mxu_dtype=jnp.bfloat16):
    """adj = activation(z1 @ z2.T)   (dropout p=0.0 -> identity).

    z1: [N, D], z2: [M, D]  ->  adj: [N, M]

    activation: elementwise callable or None (matches the torch module's
                `activation=None` case). Default is sigmoid (tanh form).
    out_dtype : output dtype; defaults to z1.dtype to preserve module
                semantics.  Pass jnp.bfloat16 to halve the dominant N*M
                output writeback (recommended for perf; sigmoid outputs in
                [0, 1] tolerate bf16 well).
    mxu_dtype : dtype the matmul operands are cast to (bf16 recommended:
                f32xf32 is multi-pass on the MXU and doubles input DMA
                bytes).  Pass None to keep operands in their input dtype.
    """
    # TODO(synk): dropout with p > 0.0 (training mode) not implemented; the
    # module default p=0.0 makes it the identity, matching eval semantics.
    # TODO(synk): for very large D (>> a few thousand) a K-tiled accumulator
    # variant would be preferable; latent-decoder D is small so we keep the
    # single-shot contraction.
    N, D = z1.shape
    M, D2 = z2.shape
    assert D == D2, "feature dims must match"

    if out_dtype is None:
        out_dtype = z1.dtype

    # Cast MXU operands in the wrapper so the HBM copies Pallas streams are
    # already narrow (inputs are only (N+M)*D elements, so this cast is cheap
    # relative to the N*M output traffic it helps hide).
    if mxu_dtype is not None and z1.dtype != mxu_dtype:
        z1 = z1.astype(mxu_dtype)
        z2 = z2.astype(mxu_dtype)

    # Clamp tile sizes to the (8,128)-rounded problem size; keep sublane/lane
    # alignment: sublane dims multiple of 8, output lane dim multiple of 128
    # (lane-dense -> unmasked vst on full tiles).  No explicit padding: the
    # grid uses pl.cdiv and ragged edge tiles are masked on store; garbage
    # rows/cols read past the array edge only affect masked-out outputs.
    tm = min(tm, _round_up(N, 8))
    tn = min(tn, _round_up(M, 128))
    grid = (pl.cdiv(N, tm), pl.cdiv(M, tn))

    kernel = functools.partial(_inner_product_decoder_kernel,
                               activation=activation)

    out = pl.pallas_call(
        kernel,
        out_shape=jax.ShapeDtypeStruct((N, M), out_dtype),
        grid=grid,
        in_specs=[
            pl.BlockSpec((tm, D), lambda i, j: (i, 0)),  # z1 row-block, full D
            pl.BlockSpec((tn, D), lambda i, j: (j, 0)),  # z2 row-block, full D
        ],
        out_specs=pl.BlockSpec((tm, tn), lambda i, j: (i, j)),
        compiler_params=pltpu.CompilerParams(
            # Both output-tile axes are independent -> shard across cores
            # (megacore / v7x dual-TC).
            dimension_semantics=("parallel", "parallel"),
            # Right-sized: ~16 MiB worst-case double-buffered footprint at
            # 1024x1024 f32 output tiles.  32 MiB leaves headroom on v7x's
            # 64 MiB per-TC VMEM and raises v5e's 16 MiB scoped default.
            vmem_limit_bytes=32 << 20,
        ),
    )(z1, z2)

    return out


if __name__ == "__main__":
    # Deterministic, small graph-embedding-sized shapes.
    key = jax.random.PRNGKey(0)
    k1, k2 = jax.random.split(key)
    N, M, D = 128, 200, 64          # M deliberately not a multiple of 128
    z1 = jax.random.normal(k1, (N, D), dtype=jnp.float32)
    z2 = jax.random.normal(k2, (M, D), dtype=jnp.float32)

    # High-precision f32 reference (kernel uses bf16 MXU operands by default,
    # so tolerances are set accordingly).
    ref_raw = jnp.dot(z1, z2.T, precision=jax.lax.Precision.HIGHEST)
    ref = jax.nn.sigmoid(ref_raw)

    # Default: sigmoid activation, f32 output (module semantics).
    adj = jax.block_until_ready(inner_product_decoder(z1, z2))
    assert adj.shape == (N, M) and adj.dtype == jnp.float32
    assert jnp.allclose(adj, ref, atol=5e-2, rtol=1e-2)

    # activation=None case of the module.
    raw = jax.block_until_ready(inner_product_decoder(z1, z2, activation=None))
    assert raw.shape == (N, M)
    assert jnp.allclose(raw, ref_raw, atol=1.5e-1, rtol=2e-2)

    # Recommended perf config: bf16 output (halves the dominant writeback).
    adj_bf16 = jax.block_until_ready(
        inner_product_decoder(z1, z2, out_dtype=jnp.bfloat16))
    assert adj_bf16.dtype == jnp.bfloat16
    assert jnp.allclose(adj_bf16.astype(jnp.float32), ref, atol=8e-2, rtol=2e-2)

    print("KERNEL_OK")
</pallas_src>

<mosaic_0001>
module attributes {stable_mosaic.version = 11 : i64} {
  func.func @_inner_product_decoder_kernel(%arg0: i32, %arg1: i32, %arg2: memref<128x64xbf16, #tpu.memory_space<vmem>>, %arg3: memref<256x64xbf16, #tpu.memory_space<vmem>>, %arg4: memref<128x256xf32, #tpu.memory_space<vmem>>) attributes {dimension_semantics = [#tpu.dimension_semantics<parallel>, #tpu.dimension_semantics<parallel>], iteration_bounds = array<i64: 1, 1>, scalar_prefetch = 0 : i64, scratch_operands = 0 : i64, tpu.core_type = #tpu.core_type<tc>, window_params = [{transform_indices = @transform_0, window_bounds = array<i64: 128, 64>}, {transform_indices = @transform_1, window_bounds = array<i64: 256, 64>}, {transform_indices = @transform_2, window_bounds = array<i64: 128, 256>}]} {
    %c0 = arith.constant 0 : index
    %c0_0 = arith.constant 0 : index
    %0 = vector.load %arg2[%c0, %c0_0] : memref<128x64xbf16, #tpu.memory_space<vmem>>, vector<128x64xbf16>
    %c0_1 = arith.constant 0 : index
    %c0_2 = arith.constant 0 : index
    %1 = vector.load %arg3[%c0_1, %c0_2] : memref<256x64xbf16, #tpu.memory_space<vmem>>, vector<256x64xbf16>
    %cst = arith.constant dense<0.000000e+00> : vector<128x256xf32>
    %2 = tpu.matmul %0, %1, %cst {dimension_numbers = #tpu.dot_dimension_numbers<[1], [1], [0], [0], [0, 0, 1, 0], [], []>} : vector<128x64xbf16>, vector<256x64xbf16>, vector<128x256xf32> -> vector<128x256xf32>
    %cst_3 = arith.constant 5.000000e-01 : f32
    %3 = vector.broadcast %cst_3 : f32 to vector<128x256xf32>
    %4 = arith.mulf %3, %2 : vector<128x256xf32>
    %5 = math.tanh %4 : vector<128x256xf32>
    %cst_4 = arith.constant 1.000000e+00 : f32
    %6 = vector.broadcast %cst_4 : f32 to vector<128x256xf32>
    %7 = arith.addf %5, %6 : vector<128x256xf32>
    %cst_5 = arith.constant 5.000000e-01 : f32
    %8 = vector.broadcast %cst_5 : f32 to vector<128x256xf32>
    %9 = arith.mulf %8, %7 : vector<128x256xf32>
    %c0_6 = arith.constant 0 : index
    %c0_7 = arith.constant 0 : index
    %10 = vector.load %arg4[%c0_6, %c0_7] : memref<128x256xf32, #tpu.memory_space<vmem>>, vector<128x256xf32>
    tpu.vector_store %arg4[%c0_6, %c0_7], %9 {strides = array<i32>} : memref<128x256xf32, #tpu.memory_space<vmem>>, vector<128x256xf32>,
    return
  }
  func.func @transform_0(%arg0: i32, %arg1: i32) -> (i32, i32) {
    %c0_i32 = arith.constant 0 : i32
    %c0_i32_0 = arith.constant 0 : i32
    return %arg0, %c0_i32 : i32, i32
  }
  func.func @transform_1(%arg0: i32, %arg1: i32) -> (i32, i32) {
    %c0_i32 = arith.constant 0 : i32
    %c0_i32_0 = arith.constant 0 : i32
    return %arg1, %c0_i32 : i32, i32
  }
  func.func @transform_2(%arg0: i32, %arg1: i32) -> (i32, i32) {
    %c0_i32 = arith.constant 0 : i32
    return %arg0, %arg1 : i32, i32
  }
}

</mosaic_0001>

<llo_original>
// kernel: tpu_custom_call.1
$region0: #{tpu_custom_call.1}
  #allocation0 [shape = 'u32[]', space=smem, size = 0x4, offset = 0x4, fixed_abs, tag = 'smem constant byte address 0x4 - core index']
  #allocation1 [shape = 'u32[144,128]{1,0:T(1,128)}', space=vmem, size = 0x12000, scoped, tag = 'internal scratch']
  %s0 = inlined_call_operand.vmem [shape: bf16[128,64], index: 0, kind: input, shape index: {}]
  %s1 = inlined_call_operand.vmem [shape: bf16[200,64], index: 1, kind: input, shape index: {}]
  %s2 = inlined_call_operand.vmem [shape: f32[128,200], index: 2, kind: output, shape index: {}]
  %s3 = sld [smem:[#allocation0]]
  $region18: #{tpu_custom_call.1} parent=0
    _
  %s5 = ssub.s32 1, %s3
  %s6 = scalar_select 0, %s5, %s3
  // Predicated region
  $region2: #{tpu_custom_call.1} parent=0 // pred_check
    _
  $region3: #{tpu_custom_call.1} parent=0 // pred_check_branch
    %8 = sbr.rel (0) target = $region5
  $region4: #{tpu_custom_call.1} parent=0 // pred_region
    _
  $region5: #{tpu_custom_call.1} parent=0 // pred_fallthru
    _
  // Predicated region
  $region6: #{tpu_custom_call.1} parent=0 // pred_check
    _
  $region7: #{tpu_custom_call.1} parent=0 // pred_check_branch
    %10 = sbr.rel (0) target = $region9
  $region8: #{tpu_custom_call.1} parent=0 // pred_region
    _
  $region9: #{tpu_custom_call.1} parent=0 // pred_fallthru
    _
  %v12 = vld [vmem:[%s0] sm:$0xf]
  %v13 = vld [vmem:[%s0 + $0x4] sm:$0xf]
  %v14 = vld [vmem:[%s0 + $0x8] sm:$0xf]
  %v15 = vld [vmem:[%s0 + $0xc] sm:$0xf]
  %v16 = vld [vmem:[%s0 + $0x10] sm:$0xf]
  %v17 = vld [vmem:[%s0 + $0x14] sm:$0xf]
  %v18 = vld [vmem:[%s0 + $0x18] sm:$0xf]
  %v19 = vld [vmem:[%s0 + $0x1c] sm:$0xf]
  %v20 = vld [vmem:[%s0 + $0x20] sm:$0xf]
  %v21 = vld [vmem:[%s0 + $0x24] sm:$0xf]
  %v22 = vld [vmem:[%s0 + $0x28] sm:$0xf]
  %v23 = vld [vmem:[%s0 + $0x2c] sm:$0xf]
  %v24 = vld [vmem:[%s0 + $0x30] sm:$0xf]
  %v25 = vld [vmem:[%s0 + $0x34] sm:$0xf]
  %v26 = vld [vmem:[%s0 + $0x38] sm:$0xf]
  %v27 = vld [vmem:[%s0 + $0x3c] sm:$0xf]
  %v28 = vld [vmem:[%s1] sm:$0xf]
  %v29 = vld [vmem:[%s1 + $0x4] sm:$0xf]
  %v30 = vld [vmem:[%s1 + $0x8] sm:$0xf]
  %v31 = vld [vmem:[%s1 + $0xc] sm:$0xf]
  %v32 = vld [vmem:[%s1 + $0x10] sm:$0xf]
  %v33 = vld [vmem:[%s1 + $0x14] sm:$0xf]
  %v34 = vld [vmem:[%s1 + $0x18] sm:$0xf]
  %v35 = vld [vmem:[%s1 + $0x1c] sm:$0xf]
  %v36 = vld [vmem:[%s1 + $0x20] sm:$0xf]
  %v37 = vld [vmem:[%s1 + $0x24] sm:$0xf]
  %v38 = vld [vmem:[%s1 + $0x28] sm:$0xf]
  %v39 = vld [vmem:[%s1 + $0x2c] sm:$0xf]
  %v40 = vld [vmem:[%s1 + $0x30] sm:$0xf]
  %v41 = vld [vmem:[%s1 + $0x34] sm:$0xf]
  %v42 = vld [vmem:[%s1 + $0x38] sm:$0xf]
  %v43 = vld [vmem:[%s1 + $0x3c] sm:$0xf]
  %v44 = vld [vmem:[%s1 + $0x40] sm:$0xf]
  %v45 = vld [vmem:[%s1 + $0x44] sm:$0xf]
  %v46 = vld [vmem:[%s1 + $0x48] sm:$0xf]
  %v47 = vld [vmem:[%s1 + $0x4c] sm:$0xf]
  %v48 = vld [vmem:[%s1 + $0x50] sm:$0xf]
  %v49 = vld [vmem:[%s1 + $0x54] sm:$0xf]
  %v50 = vld [vmem:[%s1 + $0x58] sm:$0xf]
  %v51 = vld [vmem:[%s1 + $0x5c] sm:$0xf]
  %v52 = vld [vmem:[%s1 + $0x60] sm:$0xf]
  %v53 = vld [vmem:[%s1 + $0x64] sm:$0xf]
  %v54 = vld [vmem:[%s1 + $0x68] sm:$0xf]
  %v55 = vld [vmem:[%s1 + $0x6c] sm:$0xf]
  %v56 = vld [vmem:[%s1 + $0x70] sm:$0xf]
  %v57 = vld [vmem:[%s1 + $0x74] sm:$0xf]
  %v58 = vld [vmem:[%s1 + $0x78] sm:$0xf]
  %v59 = vld [vmem:[%s1 + $0x7c] sm:$0xf]
  %v76 = vunpack.c.l.b16 %v12
  %v77 = vunpack.c.l.b16 %v13
  %v78 = vunpack.c.l.b16 %v14
  %v79 = vunpack.c.l.b16 %v15
  %v80 = vunpack.c.l.b16 %v16
  %v81 = vunpack.c.l.b16 %v17
  %v82 = vunpack.c.l.b16 %v18
  %v83 = vunpack.c.l.b16 %v19
  %v84 = vunpack.c.l.b16 %v20
  %v85 = vunpack.c.l.b16 %v21
  %v86 = vunpack.c.l.b16 %v22
  %v87 = vunpack.c.l.b16 %v23
  %v88 = vunpack.c.l.b16 %v24
  %v89 = vunpack.c.l.b16 %v25
  %v90 = vunpack.c.l.b16 %v26
  %v91 = vunpack.c.l.b16 %v27
  %v92 = vpack.c.b16 %v77, %v76
  %v93 = vpack.c.b16 %v79, %v78
  %v94 = vpack.c.b16 %v81, %v80
  %v95 = vpack.c.b16 %v83, %v82
  %v96 = vpack.c.b16 %v85, %v84
  %v97 = vpack.c.b16 %v87, %v86
  %v98 = vpack.c.b16 %v89, %v88
  %v99 = vpack.c.b16 %v91, %v90
  %v132 = vunpack.c.l.b16 %v28
  %v133 = vunpack.c.l.b16 %v29
  %v134 = vunpack.c.l.b16 %v30
  %v135 = vunpack.c.l.b16 %v31
  %v136 = vunpack.c.l.b16 %v32
  %v137 = vunpack.c.l.b16 %v33
  %v138 = vunpack.c.l.b16 %v34
  %v139 = vunpack.c.l.b16 %v35
  %v140 = vunpack.c.l.b16 %v36
  %v141 = vunpack.c.l.b16 %v37
  %v142 = vunpack.c.l.b16 %v38
  %v143 = vunpack.c.l.b16 %v39
  %v144 = vunpack.c.l.b16 %v40
  %v145 = vunpack.c.l.b16 %v41
  %v146 = vunpack.c.l.b16 %v42
  %v147 = vunpack.c.l.b16 %v43
  %v148 = vunpack.c.l.b16 %v44
  %v149 = vunpack.c.l.b16 %v45
  %v150 = vunpack.c.l.b16 %v46
  %v151 = vunpack.c.l.b16 %v47
  %v152 = vunpack.c.l.b16 %v48
  %v153 = vunpack.c.l.b16 %v49
  %v154 = vunpack.c.l.b16 %v50
  %v155 = vunpack.c.l.b16 %v51
  %v156 = vunpack.c.l.b16 %v52
  %v157 = vunpack.c.l.b16 %v53
  %v158 = vunpack.c.l.b16 %v54
  %v159 = vunpack.c.l.b16 %v55
  %v160 = vunpack.c.l.b16 %v56
  %v161 = vunpack.c.l.b16 %v57
  %v162 = vunpack.c.l.b16 %v58
  %v163 = vunpack.c.l.b16 %v59
  %v164 = vpack.c.b16 %v133, %v132
  %v165 = vpack.c.b16 %v135, %v134
  %v166 = vpack.c.b16 %v137, %v136
  %v167 = vpack.c.b16 %v139, %v138
  %v168 = vpack.c.b16 %v141, %v140
  %v169 = vpack.c.b16 %v143, %v142
  %v170 = vpack.c.b16 %v145, %v144
  %v171 = vpack.c.b16 %v147, %v146
  %v172 = vpack.c.b16 %v149, %v148
  %v173 = vpack.c.b16 %v151, %v150
  %v174 = vpack.c.b16 %v153, %v152
  %v175 = vpack.c.b16 %v155, %v154
  %v176 = vpack.c.b16 %v157, %v156
  %v177 = vpack.c.b16 %v159, %v158
  %v178 = vpack.c.b16 %v161, %v160
  %v179 = vpack.c.b16 %v163, %v162
  %vm180 = vcmask 523264
  %v182 = vsel %vm180, %v92, 0
  %v185 = vsel %vm180, %v93, 0
  %v188 = vsel %vm180, %v94, 0
  %v191 = vsel %vm180, %v95, 0
  %v194 = vsel %vm180, %v96, 0
  %v197 = vsel %vm180, %v97, 0
  %v200 = vsel %vm180, %v98, 0
  %v203 = vsel %vm180, %v99, 0
  %v206 = vsel %vm180, %v164, 0
  %v209 = vsel %vm180, %v165, 0
  %v212 = vsel %vm180, %v166, 0
  %v215 = vsel %vm180, %v167, 0
  %v218 = vsel %vm180, %v168, 0
  %v221 = vsel %vm180, %v169, 0
  %v224 = vsel %vm180, %v170, 0
  %v227 = vsel %vm180, %v171, 0
  %v230 = vsel %vm180, %v172, 0
  %v233 = vsel %vm180, %v173, 0
  %v236 = vsel %vm180, %v174, 0
  %v239 = vsel %vm180, %v175, 0
  %v242 = vsel %vm180, %v176, 0
  %v245 = vsel %vm180, %v177, 0
  %v248 = vsel %vm180, %v178, 0
  %v251 = vsel %vm180, %v179, 0
  %253 = vmatprep.subr.bf16.mxu0 0
  %254 = vmatpush1.bf16.xpose.msra.mxu0 %v227
  %255 = vmatprep.subr.bf16.mxu0 0
  %256 = vmatpush1.bf16.xpose.msra.mxu0 %v224
  %257 = vmatprep.subr.bf16.mxu0 0
  %258 = vmatpush1.bf16.xpose.msra.mxu0 %v221
  %259 = vmatprep.subr.bf16.mxu0 0
  %260 = vmatpush1.bf16.xpose.msra.mxu0 %v218
  %261 = vmatprep.subr.bf16.mxu0 0
  %262 = vmatpush1.bf16.xpose.msra.mxu0 %v215
  %263 = vmatprep.subr.bf16.mxu0 0
  %264 = vmatpush1.bf16.xpose.msra.mxu0 %v212
  %265 = vmatprep.subr.bf16.mxu0 0
  %266 = vmatpush1.bf16.xpose.msra.mxu0 %v209
  %267 = vmatprep.subr.bf16.mxu0 0
  %268 = vmatpush1.bf16.xpose.msra.mxu0 %v206
  %269 = vmatprep.subr.bf16.mxu0 0
  %270 = vmatpush2.bf16.xpose.msra.mxu0 %v251
  %271 = vmatprep.subr.bf16.mxu0 0
  %272 = vmatpush2.bf16.xpose.msra.mxu0 %v248
  %273 = vmatprep.subr.bf16.mxu0 0
  %274 = vmatpush2.bf16.xpose.msra.mxu0 %v245
  %275 = vmatprep.subr.bf16.mxu0 0
  %276 = vmatpush2.bf16.xpose.msra.mxu0 %v242
  %277 = vmatprep.subr.bf16.mxu0 0
  %278 = vmatpush2.bf16.xpose.msra.mxu0 %v239
  %279 = vmatprep.subr.bf16.mxu0 0
  %280 = vmatpush2.bf16.xpose.msra.mxu0 %v236
  %281 = vmatprep.subr.bf16.mxu0 0
  %282 = vmatpush2.bf16.xpose.msra.mxu0 %v233
  %283 = vmatprep.subr.bf16.mxu0 0
  %284 = vmatpush2.bf16.xpose.msra.mxu0 %v230
  %285 = vmatprep.mubr.bf16.mxu0 0
  %286 = vmatmul.mubr.bf16.gmra.mxu0 %v182
  %v287 = vpop.f32.mrf.mxu0
  %v288 = vadd.f32 0.0, %v287
  %v289 = vpop.f32.mrf.mxu0
  %v290 = vadd.f32 0.0, %v289
  %v291 = vpop.f32.mrf.mxu0
  %v292 = vadd.f32 0.0, %v291
  %v293 = vpop.f32.mrf.mxu0
  %v294 = vadd.f32 0.0, %v293
  %295 = vmatprep.mubr.bf16.mxu0 0
  %296 = vmatmul.mubr.bf16.gmra.mxu0 %v185
  %v297 = vpop.f32.mrf.mxu0
  %v298 = vadd.f32 0.0, %v297
  %v299 = vpop.f32.mrf.mxu0
  %v300 = vadd.f32 0.0, %v299
  %v301 = vpop.f32.mrf.mxu0
  %v302 = vadd.f32 0.0, %v301
  %v303 = vpop.f32.mrf.mxu0
  %v304 = vadd.f32 0.0, %v303
  %305 = vmatprep.mubr.bf16.mxu0 0
  %306 = vmatmul.mubr.bf16.gmra.mxu0 %v188
  %v307 = vpop.f32.mrf.mxu0
  %v308 = vadd.f32 0.0, %v307
  %v309 = vpop.f32.mrf.mxu0
  %v310 = vadd.f32 0.0, %v309
  %v311 = vpop.f32.mrf.mxu0
  %v312 = vadd.f32 0.0, %v311
  %v313 = vpop.f32.mrf.mxu0
  %v314 = vadd.f32 0.0, %v313
  %315 = vmatprep.mubr.bf16.mxu0 0
  %316 = vmatmul.mubr.bf16.gmra.mxu0 %v191
  %v317 = vpop.f32.mrf.mxu0
  %v318 = vadd.f32 0.0, %v317
  %v319 = vpop.f32.mrf.mxu0
  %v320 = vadd.f32 0.0, %v319
  %v321 = vpop.f32.mrf.mxu0
  %v322 = vadd.f32 0.0, %v321
  %v323 = vpop.f32.mrf.mxu0
  %v324 = vadd.f32 0.0, %v323
  %325 = vmatprep.mubr.bf16.mxu0 0
  %326 = vmatmul.mubr.bf16.gmra.mxu0 %v194
  %v327 = vpop.f32.mrf.mxu0
  %v328 = vadd.f32 0.0, %v327
  %v329 = vpop.f32.mrf.mxu0
  %v330 = vadd.f32 0.0, %v329
  %v331 = vpop.f32.mrf.mxu0
  %v332 = vadd.f32 0.0, %v331
  %v333 = vpop.f32.mrf.mxu0
  %v334 = vadd.f32 0.0, %v333
  %335 = vmatprep.mubr.bf16.mxu0 0
  %336 = vmatmul.mubr.bf16.gmra.mxu0 %v197
  %v337 = vpop.f32.mrf.mxu0
  %v338 = vadd.f32 0.0, %v337
  %v339 = vpop.f32.mrf.mxu0
  %v340 = vadd.f32 0.0, %v339
  %v341 = vpop.f32.mrf.mxu0
  %v342 = vadd.f32 0.0, %v341
  %v343 = vpop.f32.mrf.mxu0
  %v344 = vadd.f32 0.0, %v343
  %345 = vmatprep.mubr.bf16.mxu0 0
  %346 = vmatmul.mubr.bf16.gmra.mxu0 %v200
  %v347 = vpop.f32.mrf.mxu0
  %v348 = vadd.f32 0.0, %v347
  %v349 = vpop.f32.mrf.mxu0
  %v350 = vadd.f32 0.0, %v349
  %v351 = vpop.f32.mrf.mxu0
  %v352 = vadd.f32 0.0, %v351
  %v353 = vpop.f32.mrf.mxu0
  %v354 = vadd.f32 0.0, %v353
  %355 = vmatprep.mubr.bf16.mxu0 0
  %356 = vmatmul.mubr.bf16.gmra.mxu0 %v203
  %v357 = vpop.f32.mrf.mxu0
  %v358 = vadd.f32 0.0, %v357
  %v359 = vpop.f32.mrf.mxu0
  %v360 = vadd.f32 0.0, %v359
  %v361 = vpop.f32.mrf.mxu0
  %v362 = vadd.f32 0.0, %v361
  %v363 = vpop.f32.mrf.mxu0
  %v364 = vadd.f32 0.0, %v363
  %365 = vdwg.mxu0
  %v366 = vmul.f32 %v288, 0.5
  %v367 = vmul.f32 %v290, 0.5
  %v368 = vmul.f32 %v292, 0.5
  %v369 = vmul.f32 %v294, 0.5
  %v370 = vmul.f32 %v298, 0.5
  %v371 = vmul.f32 %v300, 0.5
  %v372 = vmul.f32 %v302, 0.5
  %v373 = vmul.f32 %v304, 0.5
  %v374 = vmul.f32 %v308, 0.5
  %v375 = vmul.f32 %v310, 0.5
  %v376 = vmul.f32 %v312, 0.5
  %v377 = vmul.f32 %v314, 0.5
  %v378 = vmul.f32 %v318, 0.5
  %v379 = vmul.f32 %v320, 0.5
  %v380 = vmul.f32 %v322, 0.5
  %v381 = vmul.f32 %v324, 0.5
  %v382 = vmul.f32 %v328, 0.5
  %v383 = vmul.f32 %v330, 0.5
  %v384 = vmul.f32 %v332, 0.5
  %v385 = vmul.f32 %v334, 0.5
  %v386 = vmul.f32 %v338, 0.5
  %v387 = vmul.f32 %v340, 0.5
  %v388 = vmul.f32 %v342, 0.5
  %v389 = vmul.f32 %v344, 0.5
  %v390 = vmul.f32 %v348, 0.5
  %v391 = vmul.f32 %v350, 0.5
  %v392 = vmul.f32 %v352, 0.5
  %v393 = vmul.f32 %v354, 0.5
  %v394 = vmul.f32 %v358, 0.5
  %v395 = vmul.f32 %v360, 0.5
  %v396 = vmul.f32 %v362, 0.5
  %v397 = vmul.f32 %v364, 0.5
  %v398 = vtanh.pop %v366
  %v399 = vtanh.pop %v367
  %v400 = vtanh.pop %v368
  %v401 = vtanh.pop %v369
  %v402 = vtanh.pop %v370
  %v403 = vtanh.pop %v371
  %v404 = vtanh.pop %v372
  %v405 = vtanh.pop %v373
  %v406 = vtanh.pop %v374
  %v407 = vtanh.pop %v375
  %v408 = vtanh.pop %v376
  %v409 = vtanh.pop %v377
  %v410 = vtanh.pop %v378
  %v411 = vtanh.pop %v379
  %v412 = vtanh.pop %v380
  %v413 = vtanh.pop %v381
  %v414 = vtanh.pop %v382
  %v415 = vtanh.pop %v383
  %v416 = vtanh.pop %v384
  %v417 = vtanh.pop %v385
  %v418 = vtanh.pop %v386
  %v419 = vtanh.pop %v387
  %v420 = vtanh.pop %v388
  %v421 = vtanh.pop %v389
  %v422 = vtanh.pop %v390
  %v423 = vtanh.pop %v391
  %v424 = vtanh.pop %v392
  %v425 = vtanh.pop %v393
  %v426 = vtanh.pop %v394
  %v427 = vtanh.pop %v395
  %v428 = vtanh.pop %v396
  %v429 = vtanh.pop %v397
  %v430 = vadd.f32 %v398, 1.0
  %v431 = vadd.f32 %v399, 1.0
  %v432 = vadd.f32 %v400, 1.0
  %v433 = vadd.f32 %v401, 1.0
  %v434 = vadd.f32 %v402, 1.0
  %v435 = vadd.f32 %v403, 1.0
  %v436 = vadd.f32 %v404, 1.0
  %v437 = vadd.f32 %v405, 1.0
  %v438 = vadd.f32 %v406, 1.0
  %v439 = vadd.f32 %v407, 1.0
  %v440 = vadd.f32 %v408, 1.0
  %v441 = vadd.f32 %v409, 1.0
  %v442 = vadd.f32 %v410, 1.0
  %v443 = vadd.f32 %v411, 1.0
  %v444 = vadd.f32 %v412, 1.0
  %v445 = vadd.f32 %v413, 1.0
  %v446 = vadd.f32 %v414, 1.0
  %v447 = vadd.f32 %v415, 1.0
  %v448 = vadd.f32 %v416, 1.0
  %v449 = vadd.f32 %v417, 1.0
  %v450 = vadd.f32 %v418, 1.0
  %v451 = vadd.f32 %v419, 1.0
  %v452 = vadd.f32 %v420, 1.0
  %v453 = vadd.f32 %v421, 1.0
  %v454 = vadd.f32 %v422, 1.0
  %v455 = vadd.f32 %v423, 1.0
  %v456 = vadd.f32 %v424, 1.0
  %v457 = vadd.f32 %v425, 1.0
  %v458 = vadd.f32 %v426, 1.0
  %v459 = vadd.f32 %v427, 1.0
  %v460 = vadd.f32 %v428, 1.0
  %v461 = vadd.f32 %v429, 1.0
  %v462 = vmul.f32 %v430, 0.5
  %v463 = vmul.f32 %v431, 0.5
  %v464 = vmul.f32 %v432, 0.5
  %v465 = vmul.f32 %v433, 0.5
  %v466 = vmul.f32 %v434, 0.5
  %v467 = vmul.f32 %v435, 0.5
  %v468 = vmul.f32 %v436, 0.5
  %v469 = vmul.f32 %v437, 0.5
  %v470 = vmul.f32 %v438, 0.5
  %v471 = vmul.f32 %v439, 0.5
  %v472 = vmul.f32 %v440, 0.5
  %v473 = vmul.f32 %v441, 0.5
  %v474 = vmul.f32 %v442, 0.5
  %v475 = vmul.f32 %v443, 0.5
  %v476 = vmul.f32 %v444, 0.5
  %v477 = vmul.f32 %v445, 0.5
  %v478 = vmul.f32 %v446, 0.5
  %v479 = vmul.f32 %v447, 0.5
  %v480 = vmul.f32 %v448, 0.5
  %v481 = vmul.f32 %v449, 0.5
  %v482 = vmul.f32 %v450, 0.5
  %v483 = vmul.f32 %v451, 0.5
  %v484 = vmul.f32 %v452, 0.5
  %v485 = vmul.f32 %v453, 0.5
  %v486 = vmul.f32 %v454, 0.5
  %v487 = vmul.f32 %v455, 0.5
  %v488 = vmul.f32 %v456, 0.5
  %v489 = vmul.f32 %v457, 0.5
  %v490 = vmul.f32 %v458, 0.5
  %v491 = vmul.f32 %v459, 0.5
  %v492 = vmul.f32 %v460, 0.5
  %v493 = vmul.f32 %v461, 0.5
  %494 = vst [vmem:[%s2] sm:$0xff] %v462
  %495 = vst [vmem:[%s2 + $0x8] sm:$0xff] %v463
  %496 = vst [vmem:[%s2 + $0x10] sm:$0xff] %v464
  %497 = vst [vmem:[%s2 + $0x18] sm:$0xff] %v465
  %498 = vst [vmem:[%s2 + $0x20] sm:$0xff] %v466
  %499 = vst [vmem:[%s2 + $0x28] sm:$0xff] %v467
  %500 = vst [vmem:[%s2 + $0x30] sm:$0xff] %v468
  %501 = vst [vmem:[%s2 + $0x38] sm:$0xff] %v469
  %502 = vst [vmem:[%s2 + $0x40] sm:$0xff] %v470
  %503 = vst [vmem:[%s2 + $0x48] sm:$0xff] %v471
  %504 = vst [vmem:[%s2 + $0x50] sm:$0xff] %v472
  %505 = vst [vmem:[%s2 + $0x58] sm:$0xff] %v473
  %506 = vst [vmem:[%s2 + $0x60] sm:$0xff] %v474
  %507 = vst [vmem:[%s2 + $0x68] sm:$0xff] %v475
  %508 = vst [vmem:[%s2 + $0x70] sm:$0xff] %v476
  %509 = vst [vmem:[%s2 + $0x78] sm:$0xff] %v477
  %510 = vst [vmem:[%s2 + $0x80] sm:$0xff] %v478
  %511 = vst [vmem:[%s2 + $0x88] sm:$0xff] %v479
  %512 = vst [vmem:[%s2 + $0x90] sm:$0xff] %v480
  %513 = vst [vmem:[%s2 + $0x98] sm:$0xff] %v481
  %514 = vst [vmem:[%s2 + $0xa0] sm:$0xff] %v482
  %515 = vst [vmem:[%s2 + $0xa8] sm:$0xff] %v483
  %516 = vst [vmem:[%s2 + $0xb0] sm:$0xff] %v484
  %517 = vst [vmem:[%s2 + $0xb8] sm:$0xff] %v485
  %518 = vst [vmem:[%s2 + $0xc0] sm:$0xff] %v486
  %519 = vst [vmem:[%s2 + $0xc8] sm:$0xff] %v487
  %520 = vst [vmem:[%s2 + $0xd0] sm:$0xff] %v488
  %521 = vst [vmem:[%s2 + $0xd8] sm:$0xff] %v489
  %522 = vst [vmem:[%s2 + $0xe0] sm:$0xff] %v490
  %523 = vst [vmem:[%s2 + $0xe8] sm:$0xff] %v491
  %524 = vst [vmem:[%s2 + $0xf0] sm:$0xff] %v492
  %525 = vst [vmem:[%s2 + $0xf8] sm:$0xff] %v493
  // Predicated region
  $region10: #{tpu_custom_call.1} parent=0 // pred_check
    _
  $region11: #{tpu_custom_call.1} parent=0 // pred_check_branch
    %527 = sbr.rel (0) target = $region13
  $region12: #{tpu_custom_call.1} parent=0 // pred_region
    _
  $region13: #{tpu_custom_call.1} parent=0 // pred_fallthru
    _
  // Predicated region
  $region14: #{tpu_custom_call.1} parent=0 // pred_check
    _
  $region15: #{tpu_custom_call.1} parent=0 // pred_check_branch
    %529 = sbr.rel (0) target = $region17
  $region16: #{tpu_custom_call.1} parent=0 // pred_region
    _
  $region17: #{tpu_custom_call.1} parent=0 // pred_fallthru
    _

</llo_original>
